<compile_context>
chip_gen: v5e
topology: v5e:2x2
jax: 0.10.0
libtpu: 0.0.40
codegen_flags: <defaults>
</compile_context>

<pallas_src>
import functools

import jax
import jax.numpy as jnp
from jax.experimental import pallas as pl
from jax.experimental.pallas import tpu as pltpu

_LANE = 128


def _binarize_kernel(x_ref, o_ref, *, hi, lo, mid):
    # out = hi if x > 0 else (lo if x < 0 else mid)
    # hi = max, lo = min, mid = 0.5*(min+max); default min/max -> pure sign().
    x = x_ref[...]
    o_ref[...] = jnp.where(x > 0, hi, jnp.where(x < 0, lo, mid)).astype(o_ref.dtype)


def _binarize_jnp(x, hi, lo, mid, dtype):
    # Same folded expression, used only for the <128-element ragged tail.
    return jnp.where(x > 0, hi, jnp.where(x < 0, lo, mid)).astype(dtype)


def _sublane_pack(dtype):
    # Min sublane tile: 8 rows for 32-bit, 16 for 16-bit, 32 for 8-bit dtypes.
    itemsize = jnp.dtype(dtype).itemsize
    return max(8, 32 // max(itemsize, 1))


def binarization(x, vmin=-1.0, vmax=1.0, *, target_block_bytes=4 * 1024 * 1024):
    """Pallas equivalent of Binarization.forward (elementwise, memory-bound).

    Note: output is cast back to x.dtype; for integer inputs with non-default
    min/max the affine result is truncated (PyTorch would promote to float).
    Intended for float activations.
    """
    orig_shape = x.shape
    dtype = x.dtype
    n = x.size
    itemsize = jnp.dtype(dtype).itemsize

    # Fold the affine transform into three baked constants.
    hi = float(vmax)
    lo = float(vmin)
    mid = 0.5 * (float(vmin) + float(vmax))
    kernel = functools.partial(_binarize_kernel, hi=hi, lo=lo, mid=mid)

    x_flat = jnp.reshape(x, (-1,))
    n_main = (n // _LANE) * _LANE

    if n_main == 0:
        # Tiny array (< one lane row): not worth a kernel launch.
        out_flat = _binarize_jnp(x_flat, hi, lo, mid, dtype)
        return jnp.reshape(out_flat, orig_shape)

    rows = n_main // _LANE
    x_main = x_flat if n_main == n else x_flat[:n_main]
    x2d = jnp.reshape(x_main, (rows, _LANE))

    # Block sizing: ~target_block_bytes per tile, sublane count a multiple of
    # the packed tile. Partial final blocks are masked by Pallas, so no row
    # padding of the array itself is needed.
    pack = _sublane_pack(dtype)
    row_tile = target_block_bytes // (_LANE * itemsize)
    row_tile = max(pack, (row_tile // pack) * pack)
    if row_tile >= rows:
        # Whole array in one block; full-extent block shape is exempt from the
        # (8,128) divisibility rule.
        row_tile = rows
    grid = (pl.cdiv(rows, row_tile),)

    out2d = pl.pallas_call(
        kernel,
        out_shape=jax.ShapeDtypeStruct((rows, _LANE), dtype),
        grid_spec=pltpu.PrefetchScalarGridSpec(
            num_scalar_prefetch=0,
            grid=grid,
            in_specs=[pl.BlockSpec((row_tile, _LANE), lambda i: (i, 0))],
            out_specs=pl.BlockSpec((row_tile, _LANE), lambda i: (i, 0)),
        ),
        compiler_params=pltpu.CompilerParams(
            dimension_semantics=("parallel",),
            # 2 (in/out) x 2 (double-buffer) x ~4 MiB block = ~16 MiB; admit it
            # explicitly regardless of the generation's scoped-VMEM default.
            vmem_limit_bytes=32 * 1024 * 1024,
            # Let an elementwise producer fuse into this call instead of
            # forcing an extra HBM materialization of x.
            allow_input_fusion=[True],
        ),
        cost_estimate=pl.CostEstimate(
            flops=2 * n_main,
            transcendentals=0,
            bytes_accessed=2 * n_main * itemsize,
        ),
    )(x2d)

    out_main = jnp.reshape(out2d, (-1,))
    if n_main == n:
        out_flat = out_main
    else:
        # Ragged tail (<128 elements): tiny jnp expression, then stitch.
        tail = _binarize_jnp(x_flat[n_main:], hi, lo, mid, dtype)
        out_flat = jnp.concatenate([out_main, tail])
    return jnp.reshape(out_flat, orig_shape)


def _reference(x, vmin=-1.0, vmax=1.0):
    return 0.5 * (jnp.sign(x) * (vmax - vmin) + vmin + vmax)


# TODO(synk): backward straight-through estimator (BinarizeFunction.backward)
# is not implemented here; only the module forward pass is translated.

if __name__ == "__main__":
    key = jax.random.PRNGKey(0)
    # NCHW input, consistent with typical conv-net usage of this module.
    x = jax.random.normal(key, (2, 4, 16, 16), dtype=jnp.float32)
    # Include an exact zero to exercise sign(0) == 0.
    x = x.at[0, 0, 0, 0].set(0.0)

    # Default min/max path (pure sign).
    out = jax.block_until_ready(binarization(x, vmin=-1.0, vmax=1.0))
    ref = _reference(x, -1.0, 1.0)
    assert out.shape == x.shape and out.dtype == x.dtype
    assert jnp.allclose(out, ref), "mismatch vs reference (default min/max)"

    # Non-default min/max path (affine select constants).
    out2 = jax.block_until_ready(binarization(x, vmin=0.0, vmax=2.0))
    ref2 = _reference(x, 0.0, 2.0)
    assert jnp.allclose(out2, ref2), "mismatch vs reference (affine min/max)"

    # Ragged size (n not a multiple of 128): aligned prefix via Pallas, tail
    # via the tiny jnp expression.
    xr = jax.random.normal(jax.random.PRNGKey(1), (3, 5, 31), dtype=jnp.float32)
    out3 = jax.block_until_ready(binarization(xr))
    assert jnp.allclose(out3, _reference(xr)), "mismatch vs reference (ragged)"

    # bf16 input exercises the 16-row sublane packing path.
    xb = jax.random.normal(jax.random.PRNGKey(2), (4, 8, 32), dtype=jnp.bfloat16)
    out4 = jax.block_until_ready(binarization(xb))
    assert out4.dtype == jnp.bfloat16
    assert jnp.allclose(out4.astype(jnp.float32),
                        _reference(xb.astype(jnp.float32))), "mismatch (bf16)"

    print("KERNEL_OK")
</pallas_src>

<mosaic_0001>
module attributes {stable_mosaic.version = 11 : i64} {
  func.func @_binarize_kernel(%arg0: i32, %arg1: memref<16x128xf32, #tpu.memory_space<vmem>>, %arg2: memref<16x128xf32, #tpu.memory_space<vmem>>) attributes {dimension_semantics = [#tpu.dimension_semantics<parallel>], iteration_bounds = array<i64: 1>, scalar_prefetch = 0 : i64, scratch_operands = 0 : i64, tpu.core_type = #tpu.core_type<tc>, window_params = [{transform_indices = @transform_0, window_bounds = array<i64: 16, 128>}, {transform_indices = @transform_1, window_bounds = array<i64: 16, 128>}]} {
    %c0 = arith.constant 0 : index
    %c0_0 = arith.constant 0 : index
    %0 = vector.load %arg1[%c0, %c0_0] : memref<16x128xf32, #tpu.memory_space<vmem>>, vector<16x128xf32>
    %cst = arith.constant 0.000000e+00 : f32
    %1 = vector.broadcast %cst : f32 to vector<16x128xf32>
    %2 = arith.cmpf ogt, %0, %1 : vector<16x128xf32>
    %cst_1 = arith.constant 0.000000e+00 : f32
    %3 = vector.broadcast %cst_1 : f32 to vector<16x128xf32>
    %4 = arith.cmpf olt, %0, %3 : vector<16x128xf32>
    %cst_2 = arith.constant -1.000000e+00 : f32
    %cst_3 = arith.constant 0.000000e+00 : f32
    %5 = vector.broadcast %cst_2 : f32 to vector<16x128xf32>
    %6 = vector.broadcast %cst_3 : f32 to vector<16x128xf32>
    %7 = arith.select %4, %5, %6 : vector<16x128xi1>, vector<16x128xf32>
    %cst_4 = arith.constant 1.000000e+00 : f32
    %8 = vector.broadcast %cst_4 : f32 to vector<16x128xf32>
    %9 = arith.select %2, %8, %7 : vector<16x128xi1>, vector<16x128xf32>
    %c0_5 = arith.constant 0 : index
    %c0_6 = arith.constant 0 : index
    %10 = vector.load %arg2[%c0_5, %c0_6] : memref<16x128xf32, #tpu.memory_space<vmem>>, vector<16x128xf32>
    tpu.vector_store %arg2[%c0_5, %c0_6], %9 {strides = array<i32>} : memref<16x128xf32, #tpu.memory_space<vmem>>, vector<16x128xf32>,
    return
  }
  func.func @transform_0(%arg0: i32) -> (i32, i32) {
    %c0_i32 = arith.constant 0 : i32
    %c0_i32_0 = arith.constant 0 : i32
    return %arg0, %c0_i32 : i32, i32
  }
  func.func @transform_1(%arg0: i32) -> (i32, i32) {
    %c0_i32 = arith.constant 0 : i32
    %c0_i32_0 = arith.constant 0 : i32
    return %arg0, %c0_i32 : i32, i32
  }
}

</mosaic_0001>

<llo_original>
// kernel: tpu_custom_call.1
$region0: #{tpu_custom_call.1}
  #allocation0 [shape = 'u32[]', space=smem, size = 0x4, offset = 0x4, fixed_abs, tag = 'smem constant byte address 0x4 - core index']
  #allocation1 [shape = 'u32[72,128]{1,0:T(1,128)}', space=vmem, size = 0x9000, scoped, tag = 'internal scratch']
  %s0 = inlined_call_operand.hbm [shape: f32[16,128], index: 0, kind: input, shape index: {}]
  %s1 = inlined_call_operand.hbm [shape: f32[16,128], index: 1, kind: output, shape index: {}]
  %s2 = sld [smem:[#allocation0]]
  $region18: #{tpu_custom_call.1} parent=0
    _
  %s4 = ssub.s32 1, %s2
  %s5 = scalar_select 0, %s4, %s2
  $region1: #{tpu_custom_call.1} parent=0
    #allocation2 [shape = 'u8[8192]{0}', space=vmem, size = 0x2000, scoped, tag = 'input window, operand 0, single buffered']
    #allocation3 [shape = 's32[1]{0}', space=sflag, size = 0x4, scoped, tag = 'scoped memory for tpu_custom_call.1']
    #allocation4 [shape = 's32[1]{0}', space=sflag, size = 0x4, scoped, tag = 'scoped memory for tpu_custom_call.1']
    #allocation5 [shape = 'u8[8192]{0}', space=vmem, size = 0x2000, scoped, tag = 'output window, operand 0, single buffered']
    %6 = vsyncpa [#allocation3], 0
    %7 = vsyncpa [#allocation4], 0
    // Predicated region
    $region2: #{tpu_custom_call.1} parent=1 // pred_check
      _
    $region3: #{tpu_custom_call.1} parent=1 // pred_check_branch
      %9 = sbr.rel (0) target = $region5
    $region4: #{tpu_custom_call.1} parent=1 // pred_region
      %11 = vsyncadd [#allocation3], 0
      %s12 = sshll.u32 %s0, 4
      %s13 = int_to_ptr.hbm [resolvable:$true] %s12
      %s14 = sshll.u32 [#allocation2], 4
      %s15 = int_to_ptr.vmem [resolvable:$true] %s14
      %20 = dma.hbm_to_vmem [thread:$0]  %s13, 256, %s15, [#allocation3], 128, 128, 8
    $region5: #{tpu_custom_call.1} parent=1 // pred_fallthru
      _
    // Predicated region
    $region6: #{tpu_custom_call.1} parent=1 // pred_check
      _
    $region7: #{tpu_custom_call.1} parent=1 // pred_check_branch
      %22 = sbr.rel (0) target = $region9
    $region8: #{tpu_custom_call.1} parent=1 // pred_region
      %24 = dma.done [#allocation3], 256
    $region9: #{tpu_custom_call.1} parent=1 // pred_fallthru
      _
    %v25 = vld [vmem:[#allocation2] sm:$0xff]
    %v26 = vld [vmem:[#allocation2 + $0x8] sm:$0xff]
    %vm27 = vcmp.gt.f32.partialorder %v25, 0.0
    %vm28 = vcmp.gt.f32.partialorder %v26, 0.0
    %vm29 = vcmp.lt.f32.partialorder %v25, 0.0
    %vm30 = vcmp.lt.f32.partialorder %v26, 0.0
    %v31 = vsel %vm29, -1.0, 0.0
    %v32 = vsel %vm30, -1.0, 0.0
    %v33 = vsel %vm27, 1.0, %v31
    %v34 = vsel %vm28, 1.0, %v32
    %35 = vst [vmem:[#allocation5] sm:$0xff] %v33
    %36 = vst [vmem:[#allocation5 + $0x8] sm:$0xff] %v34
    // Predicated region
    $region10: #{tpu_custom_call.1} parent=1 // pred_check
      _
    $region11: #{tpu_custom_call.1} parent=1 // pred_check_branch
      %38 = sbr.rel (0) target = $region13
    $region12: #{tpu_custom_call.1} parent=1 // pred_region
      %40 = vsyncadd [#allocation4], 0
      %s41 = sshll.u32 [#allocation5], 4
      %s42 = int_to_ptr.vmem [resolvable:$true] %s41
      %s43 = sshll.u32 %s1, 4
      %s44 = int_to_ptr.hbm [resolvable:$true] %s43
      %49 = dma.vmem_to_hbm [thread:$0]  %s42, 256, %s44, [#allocation4], 128, 128, 8
    $region13: #{tpu_custom_call.1} parent=1 // pred_fallthru
      _
    // Predicated region
    $region14: #{tpu_custom_call.1} parent=1 // pred_check
      _
    $region15: #{tpu_custom_call.1} parent=1 // pred_check_branch
      %51 = sbr.rel (0) target = $region17
    $region16: #{tpu_custom_call.1} parent=1 // pred_region
      %53 = dma.done [#allocation4], 256
    $region17: #{tpu_custom_call.1} parent=1 // pred_fallthru
      _
    %54 = vsyncpa [#allocation3], 1
    %55 = vsyncpa [#allocation4], 1

</llo_original>
